<compile_context>
chip_gen: v6e
topology: v6e:2x2x1
jax: 0.10.0
libtpu: 0.0.40
codegen_flags: <defaults>
</compile_context>

<pallas_src>
import functools
import math

import jax
import jax.numpy as jnp
from jax import lax
from jax.experimental import pallas as pl
from jax.experimental.pallas import tpu as pltpu

NEGATIVE_SLOPE = 1.0  # mirrors `negative_slope` in the torch forward
KH, KW = 3, 3


def _rowcol_from_lane(lane, H, W):
    """Per-image (row, col) from the flat (batch, spatial) lane index (cheap bit ops)."""
    HW = H * W
    if (HW & (HW - 1)) == 0:
        pos = lane & (HW - 1)
    else:
        pos = lane % HW
    if (W & (W - 1)) == 0:
        row = pos >> (W.bit_length() - 1)
        col = pos & (W - 1)
    else:
        row = pos // W
        col = pos % W
    return row, col


def _conv_leaky_kernel(x_ref, w_ref, o_ref, rhs_ref, *, H, W, negative_slope):
    # x_ref  : (Cin,  L)  channels on sublanes, (batch, spatial) flattened on lanes
    # w_ref  : (Cout, K)  K = KH*KW*Cin + 1, last column is the bias
    # o_ref  : (Cout, L)  lane-dense output block
    # rhs_ref: (K,    L)  VMEM scratch holding the stacked im2col RHS
    Cin, L = x_ref.shape
    x = x_ref[...]

    # Border masks for padding=1, computed once at shape (1, L), broadcast over channels.
    lane = lax.broadcasted_iota(jnp.int32, (1, L), 1)
    row, col = _rowcol_from_lane(lane, H, W)
    row_ok = {-1: row >= 1, 0: None, 1: row < (H - 1)}
    col_ok = {-1: col >= 1, 0: None, 1: col < (W - 1)}

    # Stack the 9 lane-rolled + masked taps along the K (sublane) axis of the scratch.
    for kh in range(KH):
        dh = kh - 1
        for kw in range(KW):
            dw = kw - 1
            s = dh * W + dw  # out[p] uses in[p + s]
            t = kh * KW + kw
            tap = x if s == 0 else pltpu.roll(x, shift=(-s) % L, axis=1)
            conds = [c for c in (row_ok[dh], col_ok[dw]) if c is not None]
            if conds:
                mask = conds[0] if len(conds) == 1 else conds[0] & conds[1]
                tap = jnp.where(mask, tap, 0.0)
            rhs_ref[t * Cin:(t + 1) * Cin, :] = tap

    # Constant-ones row: folds the bias (last weight column) into the matmul.
    rhs_ref[KH * KW * Cin:KH * KW * Cin + 1, :] = jnp.ones((1, L), jnp.float32)

    # Single K=82 MXU matmul: (Cout, K) x (K, L) -> (Cout, L).
    acc = jnp.dot(w_ref[...], rhs_ref[...], preferred_element_type=jnp.float32)

    if negative_slope != 1.0:
        # General leaky-relu path; skipped at trace time since slope == 1.0 (identity).
        acc = jnp.where(acc > 0, acc, acc * negative_slope)
    o_ref[...] = acc.astype(o_ref.dtype)


def _images_per_step(N, HW, max_lanes=4096):
    """Largest divisor of N with NB*HW <= max_lanes (at least 1)."""
    nb = max(1, min(N, max_lanes // max(HW, 1)))
    while N % nb:
        nb -= 1
    return nb


def conv2d_leaky(x_nchw, weight_oihw, bias, negative_slope=NEGATIVE_SLOPE):
    """Conv2d(stride=1, padding=1) + where(y>0, y, y*slope), torch NCHW semantics."""
    N, Cin, H, W = x_nchw.shape
    Cout = weight_oihw.shape[0]
    HW = H * W
    K = KH * KW * Cin + 1

    NB = _images_per_step(N, HW)
    steps = N // NB
    L = NB * HW

    # Channels on sublanes, (batch, spatial) flat on lanes (tiny one-off host transpose).
    x_cl = jnp.transpose(x_nchw, (1, 0, 2, 3)).reshape(Cin, N * HW)

    # Weights as one (Cout, K) matmul operand, columns ordered (kh, kw, cin); bias folded
    # in as the last column (matches the ones row in the RHS).
    w_mat = jnp.transpose(weight_oihw, (0, 2, 3, 1)).reshape(Cout, KH * KW * Cin)
    w_mat = jnp.concatenate([w_mat, bias.reshape(Cout, 1).astype(w_mat.dtype)], axis=1)

    kernel = functools.partial(_conv_leaky_kernel, H=H, W=W,
                               negative_slope=negative_slope)

    out_cl = pl.pallas_call(
        kernel,
        out_shape=jax.ShapeDtypeStruct((Cout, N * HW), jnp.float32),
        grid_spec=pltpu.PrefetchScalarGridSpec(
            num_scalar_prefetch=0,
            grid=(steps,),  # one NB-image block per step (N=2 -> single step, 512 lanes)
            in_specs=[
                pl.BlockSpec((Cin, L), lambda g: (0, g)),
                pl.BlockSpec((Cout, K), lambda g: (0, 0)),  # stays resident across steps
            ],
            out_specs=pl.BlockSpec((Cout, L), lambda g: (0, g)),
            scratch_shapes=[pltpu.VMEM((K, L), jnp.float32)],
        ),
        compiler_params=pltpu.CompilerParams(
            dimension_semantics=(("parallel",) if steps > 1 else ("arbitrary",))),
    )(x_cl, w_mat)

    return out_cl.reshape(Cout, N, H, W).transpose(1, 0, 2, 3)


def _reference(x_nchw, weight_oihw, bias):
    y = lax.conv_general_dilated(
        x_nchw, weight_oihw, window_strides=(1, 1), padding=((1, 1), (1, 1)),
        dimension_numbers=("NCHW", "OIHW", "NCHW"))
    y = y + bias.reshape(1, -1, 1, 1)
    return jnp.where(y > 0, y, y * NEGATIVE_SLOPE)


if __name__ == "__main__":
    key = jax.random.PRNGKey(0)
    kx, kw, kb = jax.random.split(key, 3)

    N, C, H, W = 2, 9, 16, 16  # Conv2d(9, 9, 3) -> 9 input / 9 output channels
    x = jax.random.normal(kx, (N, C, H, W), dtype=jnp.float32)

    # Deterministic Conv2d(9, 9, 3) parameters (kaiming-uniform-ish bound).
    fan_in = C * KH * KW
    bound = 1.0 / math.sqrt(fan_in)
    weight = jax.random.uniform(kw, (9, 9, KH, KW), jnp.float32, -bound, bound)
    bias = jax.random.uniform(kb, (9,), jnp.float32, -bound, bound)

    out = conv2d_leaky(x, weight, bias)
    out = jax.block_until_ready(out)

    ref = _reference(x, weight, bias)
    assert out.shape == (N, 9, H, W)
    assert jnp.allclose(out, ref, atol=1e-4, rtol=1e-4), "mismatch vs reference"

    print("KERNEL_OK")
</pallas_src>

<mosaic_0001>
module attributes {stable_mosaic.version = 11 : i64} {
  func.func @_conv_leaky_kernel(%arg0: i32, %arg1: memref<9x512xf32, #tpu.memory_space<vmem>>, %arg2: memref<9x82xf32, #tpu.memory_space<vmem>>, %arg3: memref<9x512xf32, #tpu.memory_space<vmem>>, %arg4: memref<82x512xf32, #tpu.memory_space<vmem>>) attributes {dimension_semantics = [#tpu.dimension_semantics<arbitrary>], iteration_bounds = array<i64: 1>, scalar_prefetch = 0 : i64, scratch_operands = 1 : i64, tpu.core_type = #tpu.core_type<tc>, window_params = [{transform_indices = @transform_0, window_bounds = array<i64: 9, 512>}, {pipeline_mode = #tpu.pipeline_mode<synchronous>, transform_indices = @transform_1, window_bounds = array<i64: 9, 82>}, {transform_indices = @transform_2, window_bounds = array<i64: 9, 512>}]} {
    %c0 = arith.constant 0 : index
    %c0_0 = arith.constant 0 : index
    %0 = vector.load %arg1[%c0, %c0_0] : memref<9x512xf32, #tpu.memory_space<vmem>>, vector<9x512xf32>
    %1 = tpu.iota {dimensions = array<i32: 1>} : vector<1x512xi32>
    %c255_i32 = arith.constant 255 : i32
    %2 = vector.broadcast %c255_i32 : i32 to vector<1x512xi32>
    %3 = arith.andi %1, %2 : vector<1x512xi32>
    %c4_i32 = arith.constant 4 : i32
    %4 = vector.broadcast %c4_i32 : i32 to vector<1x512xi32>
    %5 = arith.shrsi %3, %4 : vector<1x512xi32>
    %c15_i32 = arith.constant 15 : i32
    %6 = vector.broadcast %c15_i32 : i32 to vector<1x512xi32>
    %7 = arith.andi %3, %6 : vector<1x512xi32>
    %c1_i32 = arith.constant 1 : i32
    %8 = vector.broadcast %c1_i32 : i32 to vector<1x512xi32>
    %9 = arith.cmpi sge, %5, %8 : vector<1x512xi32>
    %c15_i32_1 = arith.constant 15 : i32
    %10 = vector.broadcast %c15_i32_1 : i32 to vector<1x512xi32>
    %11 = arith.cmpi slt, %5, %10 : vector<1x512xi32>
    %c1_i32_2 = arith.constant 1 : i32
    %12 = vector.broadcast %c1_i32_2 : i32 to vector<1x512xi32>
    %13 = arith.cmpi sge, %7, %12 : vector<1x512xi32>
    %c15_i32_3 = arith.constant 15 : i32
    %14 = vector.broadcast %c15_i32_3 : i32 to vector<1x512xi32>
    %15 = arith.cmpi slt, %7, %14 : vector<1x512xi32>
    %c17_i32 = arith.constant 17 : i32
    %16 = tpu.dynamic_rotate %0 by %c17_i32 dim 1 : vector<9x512xf32>, i32 -> vector<9x512xf32>
    %17 = arith.andi %9, %13 : vector<1x512xi1>
    %cst = arith.constant 0.000000e+00 : f32
    %18 = vector.shape_cast %17 : vector<1x512xi1> to vector<1x512xi1>
    %19 = vector.broadcast %18 : vector<1x512xi1> to vector<9x512xi1>
    %20 = vector.broadcast %cst : f32 to vector<9x512xf32>
    %21 = arith.select %19, %16, %20 : vector<9x512xi1>, vector<9x512xf32>
    %c0_4 = arith.constant 0 : index
    %c0_5 = arith.constant 0 : index
    %22 = vector.load %arg4[%c0_4, %c0_5] : memref<82x512xf32, #tpu.memory_space<vmem>>, vector<9x512xf32>
    tpu.vector_store %arg4[%c0_4, %c0_5], %21 {strides = array<i32>} : memref<82x512xf32, #tpu.memory_space<vmem>>, vector<9x512xf32>,
    %c16_i32 = arith.constant 16 : i32
    %23 = tpu.dynamic_rotate %0 by %c16_i32 dim 1 : vector<9x512xf32>, i32 -> vector<9x512xf32>
    %cst_6 = arith.constant 0.000000e+00 : f32
    %24 = vector.shape_cast %9 : vector<1x512xi1> to vector<1x512xi1>
    %25 = vector.broadcast %24 : vector<1x512xi1> to vector<9x512xi1>
    %26 = vector.broadcast %cst_6 : f32 to vector<9x512xf32>
    %27 = arith.select %25, %23, %26 : vector<9x512xi1>, vector<9x512xf32>
    %c9 = arith.constant 9 : index
    %c0_7 = arith.constant 0 : index
    %28 = vector.load %arg4[%c9, %c0_7] : memref<82x512xf32, #tpu.memory_space<vmem>>, vector<9x512xf32>
    tpu.vector_store %arg4[%c9, %c0_7], %27 {strides = array<i32>} : memref<82x512xf32, #tpu.memory_space<vmem>>, vector<9x512xf32>,
    %c15_i32_8 = arith.constant 15 : i32
    %29 = tpu.dynamic_rotate %0 by %c15_i32_8 dim 1 : vector<9x512xf32>, i32 -> vector<9x512xf32>
    %30 = arith.andi %9, %15 : vector<1x512xi1>
    %cst_9 = arith.constant 0.000000e+00 : f32
    %31 = vector.shape_cast %30 : vector<1x512xi1> to vector<1x512xi1>
    %32 = vector.broadcast %31 : vector<1x512xi1> to vector<9x512xi1>
    %33 = vector.broadcast %cst_9 : f32 to vector<9x512xf32>
    %34 = arith.select %32, %29, %33 : vector<9x512xi1>, vector<9x512xf32>
    %c18 = arith.constant 18 : index
    %c0_10 = arith.constant 0 : index
    %35 = vector.load %arg4[%c18, %c0_10] : memref<82x512xf32, #tpu.memory_space<vmem>>, vector<9x512xf32>
    tpu.vector_store %arg4[%c18, %c0_10], %34 {strides = array<i32>} : memref<82x512xf32, #tpu.memory_space<vmem>>, vector<9x512xf32>,
    %c1_i32_11 = arith.constant 1 : i32
    %36 = tpu.dynamic_rotate %0 by %c1_i32_11 dim 1 : vector<9x512xf32>, i32 -> vector<9x512xf32>
    %cst_12 = arith.constant 0.000000e+00 : f32
    %37 = vector.shape_cast %13 : vector<1x512xi1> to vector<1x512xi1>
    %38 = vector.broadcast %37 : vector<1x512xi1> to vector<9x512xi1>
    %39 = vector.broadcast %cst_12 : f32 to vector<9x512xf32>
    %40 = arith.select %38, %36, %39 : vector<9x512xi1>, vector<9x512xf32>
    %c27 = arith.constant 27 : index
    %c0_13 = arith.constant 0 : index
    %41 = vector.load %arg4[%c27, %c0_13] : memref<82x512xf32, #tpu.memory_space<vmem>>, vector<9x512xf32>
    tpu.vector_store %arg4[%c27, %c0_13], %40 {strides = array<i32>} : memref<82x512xf32, #tpu.memory_space<vmem>>, vector<9x512xf32>,
    %c36 = arith.constant 36 : index
    %c0_14 = arith.constant 0 : index
    %42 = vector.load %arg4[%c36, %c0_14] : memref<82x512xf32, #tpu.memory_space<vmem>>, vector<9x512xf32>
    tpu.vector_store %arg4[%c36, %c0_14], %0 {strides = array<i32>} : memref<82x512xf32, #tpu.memory_space<vmem>>, vector<9x512xf32>,
    %c511_i32 = arith.constant 511 : i32
    %43 = tpu.dynamic_rotate %0 by %c511_i32 dim 1 : vector<9x512xf32>, i32 -> vector<9x512xf32>
    %cst_15 = arith.constant 0.000000e+00 : f32
    %44 = vector.shape_cast %15 : vector<1x512xi1> to vector<1x512xi1>
    %45 = vector.broadcast %44 : vector<1x512xi1> to vector<9x512xi1>
    %46 = vector.broadcast %cst_15 : f32 to vector<9x512xf32>
    %47 = arith.select %45, %43, %46 : vector<9x512xi1>, vector<9x512xf32>
    %c45 = arith.constant 45 : index
    %c0_16 = arith.constant 0 : index
    %48 = vector.load %arg4[%c45, %c0_16] : memref<82x512xf32, #tpu.memory_space<vmem>>, vector<9x512xf32>
    tpu.vector_store %arg4[%c45, %c0_16], %47 {strides = array<i32>} : memref<82x512xf32, #tpu.memory_space<vmem>>, vector<9x512xf32>,
    %c497_i32 = arith.constant 497 : i32
    %49 = tpu.dynamic_rotate %0 by %c497_i32 dim 1 : vector<9x512xf32>, i32 -> vector<9x512xf32>
    %50 = arith.andi %11, %13 : vector<1x512xi1>
    %cst_17 = arith.constant 0.000000e+00 : f32
    %51 = vector.shape_cast %50 : vector<1x512xi1> to vector<1x512xi1>
    %52 = vector.broadcast %51 : vector<1x512xi1> to vector<9x512xi1>
    %53 = vector.broadcast %cst_17 : f32 to vector<9x512xf32>
    %54 = arith.select %52, %49, %53 : vector<9x512xi1>, vector<9x512xf32>
    %c54 = arith.constant 54 : index
    %c0_18 = arith.constant 0 : index
    %55 = vector.load %arg4[%c54, %c0_18] : memref<82x512xf32, #tpu.memory_space<vmem>>, vector<9x512xf32>
    tpu.vector_store %arg4[%c54, %c0_18], %54 {strides = array<i32>} : memref<82x512xf32, #tpu.memory_space<vmem>>, vector<9x512xf32>,
    %c496_i32 = arith.constant 496 : i32
    %56 = tpu.dynamic_rotate %0 by %c496_i32 dim 1 : vector<9x512xf32>, i32 -> vector<9x512xf32>
    %cst_19 = arith.constant 0.000000e+00 : f32
    %57 = vector.shape_cast %11 : vector<1x512xi1> to vector<1x512xi1>
    %58 = vector.broadcast %57 : vector<1x512xi1> to vector<9x512xi1>
    %59 = vector.broadcast %cst_19 : f32 to vector<9x512xf32>
    %60 = arith.select %58, %56, %59 : vector<9x512xi1>, vector<9x512xf32>
    %c63 = arith.constant 63 : index
    %c0_20 = arith.constant 0 : index
    %61 = vector.load %arg4[%c63, %c0_20] : memref<82x512xf32, #tpu.memory_space<vmem>>, vector<9x512xf32>
    tpu.vector_store %arg4[%c63, %c0_20], %60 {strides = array<i32>} : memref<82x512xf32, #tpu.memory_space<vmem>>, vector<9x512xf32>,
    %c495_i32 = arith.constant 495 : i32
    %62 = tpu.dynamic_rotate %0 by %c495_i32 dim 1 : vector<9x512xf32>, i32 -> vector<9x512xf32>
    %63 = arith.andi %11, %15 : vector<1x512xi1>
    %cst_21 = arith.constant 0.000000e+00 : f32
    %64 = vector.shape_cast %63 : vector<1x512xi1> to vector<1x512xi1>
    %65 = vector.broadcast %64 : vector<1x512xi1> to vector<9x512xi1>
    %66 = vector.broadcast %cst_21 : f32 to vector<9x512xf32>
    %67 = arith.select %65, %62, %66 : vector<9x512xi1>, vector<9x512xf32>
    %c72 = arith.constant 72 : index
    %c0_22 = arith.constant 0 : index
    %68 = vector.load %arg4[%c72, %c0_22] : memref<82x512xf32, #tpu.memory_space<vmem>>, vector<9x512xf32>
    tpu.vector_store %arg4[%c72, %c0_22], %67 {strides = array<i32>} : memref<82x512xf32, #tpu.memory_space<vmem>>, vector<9x512xf32>,
    %cst_23 = arith.constant 1.000000e+00 : f32
    %69 = vector.broadcast %cst_23 : f32 to vector<1x512xf32>
    %c81 = arith.constant 81 : index
    %c0_24 = arith.constant 0 : index
    %70 = vector.load %arg4[%c81, %c0_24] : memref<82x512xf32, #tpu.memory_space<vmem>>, vector<1x512xf32>
    tpu.vector_store %arg4[%c81, %c0_24], %69 {strides = array<i32>} : memref<82x512xf32, #tpu.memory_space<vmem>>, vector<1x512xf32>,
    %c0_25 = arith.constant 0 : index
    %c0_26 = arith.constant 0 : index
    %71 = vector.load %arg2[%c0_25, %c0_26] : memref<9x82xf32, #tpu.memory_space<vmem>>, vector<9x82xf32>
    %c0_27 = arith.constant 0 : index
    %c0_28 = arith.constant 0 : index
    %72 = vector.load %arg4[%c0_27, %c0_28] : memref<82x512xf32, #tpu.memory_space<vmem>>, vector<82x512xf32>
    %cst_29 = arith.constant dense<0.000000e+00> : vector<9x512xf32>
    %73 = tpu.matmul %71, %72, %cst_29 {dimension_numbers = #tpu.dot_dimension_numbers<[1], [0], [0], [1], [0, 0, 1, 1], [], []>} : vector<9x82xf32>, vector<82x512xf32>, vector<9x512xf32> -> vector<9x512xf32>
    %c0_30 = arith.constant 0 : index
    %c0_31 = arith.constant 0 : index
    %74 = vector.load %arg3[%c0_30, %c0_31] : memref<9x512xf32, #tpu.memory_space<vmem>>, vector<9x512xf32>
    tpu.vector_store %arg3[%c0_30, %c0_31], %73 {strides = array<i32>} : memref<9x512xf32, #tpu.memory_space<vmem>>, vector<9x512xf32>,
    return
  }
  func.func @transform_0(%arg0: i32) -> (i32, i32) {
    %c0_i32 = arith.constant 0 : i32
    %c0_i32_0 = arith.constant 0 : i32
    return %c0_i32, %arg0 : i32, i32
  }
  func.func @transform_1(%arg0: i32) -> (i32, i32) {
    %c0_i32 = arith.constant 0 : i32
    %c0_i32_0 = arith.constant 0 : i32
    %c0_i32_1 = arith.constant 0 : i32
    return %c0_i32, %c0_i32_0 : i32, i32
  }
  func.func @transform_2(%arg0: i32) -> (i32, i32) {
    %c0_i32 = arith.constant 0 : i32
    %c0_i32_0 = arith.constant 0 : i32
    return %c0_i32, %arg0 : i32, i32
  }
}

</mosaic_0001>

<llo_original>
// kernel: tpu_custom_call.1
$region0: #{tpu_custom_call.1}
  #allocation0 [shape = 'u32[]', space=smem, size = 0x4, offset = 0x4, fixed_abs, tag = 'smem constant byte address 0x4 - core index']
  #allocation1 [shape = 'u32[144,128]{1,0:T(1,128)}', space=vmem, size = 0x12000, scoped, tag = 'internal scratch']
  #allocation2 [shape = 'f32[82,512]{1,0:T(8,128)}', space=vmem, size = 0x2c000, scoped, tag = 'scratch operand']
  %s0 = inlined_call_operand.hbm [shape: f32[9,512], index: 0, kind: input, shape index: {}]
  %s1 = inlined_call_operand.hbm [shape: f32[9,82], index: 1, kind: input, shape index: {}]
  %s2 = inlined_call_operand.hbm [shape: f32[9,512], index: 2, kind: output, shape index: {}]
  %s3 = sld [smem:[#allocation0]]
  $region26: #{tpu_custom_call.1} parent=0
    _
  %s5 = ssub.s32 1, %s3
  %s6 = scalar_select 0, %s5, %s3
  $region1: #{tpu_custom_call.1} parent=0
    #allocation3 [shape = 'u8[32768]{0}', space=vmem, size = 0x8000, scoped, tag = 'input window, operand 0, single buffered']
    #allocation4 [shape = 's32[1]{0}', space=sflag, size = 0x4, scoped, tag = 'scoped memory for tpu_custom_call.1']
    #allocation5 [shape = 's32[1]{0}', space=sflag, size = 0x4, scoped, tag = 'scoped memory for tpu_custom_call.1']
    #allocation6 [shape = 'u8[8192]{0}', space=vmem, size = 0x2000, scoped, tag = 'input window, operand 1, single buffered']
    #allocation7 [shape = 's32[1]{0}', space=sflag, size = 0x4, scoped, tag = 'scoped memory for tpu_custom_call.1']
    #allocation8 [shape = 'u8[32768]{0}', space=vmem, size = 0x8000, scoped, tag = 'output window, operand 0, single buffered']
    %7 = vsyncpa [#allocation4], 0
    %8 = vsyncpa [#allocation7], 0
    %9 = vsyncpa [#allocation5], 0
    // Predicated region
    $region2: #{tpu_custom_call.1} parent=1 // pred_check
      _
    $region3: #{tpu_custom_call.1} parent=1 // pred_check_branch
      %11 = sbr.rel (0) target = $region5
    $region4: #{tpu_custom_call.1} parent=1 // pred_region
      %s13 = ssub.s32 1024, 1024
      %14 = vsyncadd [#allocation4], %s13
      %s15 = sshll.u32 [#allocation3], 4
      %s16 = int_to_ptr.vmem [resolvable:$true] %s15
      %21 = dma.hbm_to_vmem [thread:$0]  %s0, 1024, %s16, [#allocation4], 512, 512, 32
    $region5: #{tpu_custom_call.1} parent=1 // pred_fallthru
      _
    // Predicated region
    $region6: #{tpu_custom_call.1} parent=1 // pred_check
      _
    $region7: #{tpu_custom_call.1} parent=1 // pred_check_branch
      %23 = sbr.rel (0) target = $region9
    $region8: #{tpu_custom_call.1} parent=1 // pred_region
      %s25 = ssub.s32 256, 256
      %26 = vsyncadd [#allocation7], %s25
      %s27 = sshll.u32 [#allocation6], 4
      %s28 = int_to_ptr.vmem [resolvable:$true] %s27
      %33 = dma.hbm_to_vmem [thread:$0]  %s1, 256, %s28, [#allocation7], 128, 128, 8
    $region9: #{tpu_custom_call.1} parent=1 // pred_fallthru
      _
    // Predicated region
    $region10: #{tpu_custom_call.1} parent=1 // pred_check
      _
    $region11: #{tpu_custom_call.1} parent=1 // pred_check_branch
      %35 = sbr.rel (0) target = $region13
    $region12: #{tpu_custom_call.1} parent=1 // pred_region
      %36 = dma.done [#allocation4], 1024
    $region13: #{tpu_custom_call.1} parent=1 // pred_fallthru
      _
    // Predicated region
    $region14: #{tpu_custom_call.1} parent=1 // pred_check
      _
    $region15: #{tpu_custom_call.1} parent=1 // pred_check_branch
      %38 = sbr.rel (0) target = $region17
    $region16: #{tpu_custom_call.1} parent=1 // pred_region
      %39 = dma.done [#allocation7], 256
    $region17: #{tpu_custom_call.1} parent=1 // pred_fallthru
      _
    %v40 = vld [vmem:[#allocation3] sm:$0xff]
    %v41 = vld [vmem:[#allocation3 + $0x8] sm:$0xff]
    %v42 = vld [vmem:[#allocation3 + $0x10] sm:$0xff]
    %v43 = vld [vmem:[#allocation3 + $0x18] sm:$0xff]
    %v44 = vld [vmem:[#allocation3 + $0x20] sm:$0x1]
    %v45 = vld [vmem:[#allocation3 + $0x28] sm:$0x1]
    %v46 = vld [vmem:[#allocation3 + $0x30] sm:$0x1]
    %v47 = vld [vmem:[#allocation3 + $0x38] sm:$0x1]
    %v48 = vlaneseq
    %v49 = vand.u32 %v48, 127
    %v50 = vadd.s32 %v49, 128
    %v51 = vadd.s32 %v49, 256
    %v52 = vadd.s32 %v49, 384
    %v53 = vand.u32 %v49, 255
    %v54 = vand.u32 %v50, 255
    %v55 = vand.u32 %v51, 255
    %v56 = vand.u32 %v52, 255
    %v57 = vshra.s32 %v53, 4
    %v58 = vshra.s32 %v54, 4
    %v59 = vshra.s32 %v55, 4
    %v60 = vshra.s32 %v56, 4
    %v61 = vand.u32 %v53, 15
    %v62 = vand.u32 %v54, 15
    %v63 = vand.u32 %v55, 15
    %v64 = vand.u32 %v56, 15
    %vm65 = vcmp.ge.s32.totalorder %v57, 1
    %vm66 = vcmp.ge.s32.totalorder %v58, 1
    %vm67 = vcmp.ge.s32.totalorder %v59, 1
    %vm68 = vcmp.ge.s32.totalorder %v60, 1
    %vm69 = vcmp.lt.s32.totalorder %v57, 15
    %vm70 = vcmp.lt.s32.totalorder %v58, 15
    %vm71 = vcmp.lt.s32.totalorder %v59, 15
    %vm72 = vcmp.lt.s32.totalorder %v60, 15
    %vm73 = vcmp.ge.s32.totalorder %v61, 1
    %vm74 = vcmp.ge.s32.totalorder %v62, 1
    %vm75 = vcmp.ge.s32.totalorder %v63, 1
    %vm76 = vcmp.ge.s32.totalorder %v64, 1
    %vm77 = vcmp.lt.s32.totalorder %v61, 15
    %vm78 = vcmp.lt.s32.totalorder %v62, 15
    %vm79 = vcmp.lt.s32.totalorder %v63, 15
    %vm80 = vcmp.lt.s32.totalorder %v64, 15
    %81 = vrot.lane.b32.xlu0 %v40, 17
    %v82 = vpop.permute.xlu0 %81
    %83 = vrot.lane.b32.xlu0 %v44, 17
    %v84 = vpop.permute.xlu0 %83
    %85 = vrot.lane.b32.xlu0 %v41, 17
    %v86 = vpop.permute.xlu0 %85
    %87 = vrot.lane.b32.xlu0 %v45, 17
    %v88 = vpop.permute.xlu0 %87
    %89 = vrot.lane.b32.xlu0 %v42, 17
    %v90 = vpop.permute.xlu0 %89
    %91 = vrot.lane.b32.xlu0 %v46, 17
    %v92 = vpop.permute.xlu0 %91
    %93 = vrot.lane.b32.xlu0 %v43, 17
    %v94 = vpop.permute.xlu0 %93
    %95 = vrot.lane.b32.xlu0 %v47, 17
    %v96 = vpop.permute.xlu0 %95
    %vm97 = vcmp.lt.s32.totalorder %v49, 17
    %v98 = vsel %vm97, %v90, %v94
    %v99 = vsel %vm97, %v92, %v96
    %v100 = vsel %vm97, %v86, %v90
    %v101 = vsel %vm97, %v88, %v92
    %v102 = vsel %vm97, %v82, %v86
    %v103 = vsel %vm97, %v84, %v88
    %v104 = vsel %vm97, %v94, %v82
    %v105 = vsel %vm97, %v96, %v84
    %vm106 = vmand %vm65, %vm73
    %vm107 = vmand %vm66, %vm74
    %vm108 = vmand %vm67, %vm75
    %vm109 = vmand %vm68, %vm76
    %v110 = vsel %vm106, 1, 0
    %v111 = vsel %vm107, 1, 0
    %v112 = vsel %vm108, 1, 0
    %v113 = vsel %vm109, 1, 0
    %vm114 = vcmp.eq.s32.totalorder %v110, 1
    %vm115 = vcmp.eq.s32.totalorder %v111, 1
    %vm116 = vcmp.eq.s32.totalorder %v112, 1
    %vm117 = vcmp.eq.s32.totalorder %v113, 1
    %v118 = vsel %vm114, %v104, 0.0
    %v119 = vsel %vm115, %v102, 0.0
    %v120 = vsel %vm116, %v100, 0.0
    %v121 = vsel %vm117, %v98, 0.0
    %v122 = vsel %vm114, %v105, 0.0
    %v123 = vsel %vm115, %v103, 0.0
    %v124 = vsel %vm116, %v101, 0.0
    %v125 = vsel %vm117, %v99, 0.0
    %126 = vst [vmem:[#allocation2] sm:$0xff] %v118
    %127 = vst [vmem:[#allocation2 + $0x8] sm:$0xff] %v119
    %128 = vst [vmem:[#allocation2 + $0x10] sm:$0xff] %v120
    %129 = vst [vmem:[#allocation2 + $0x18] sm:$0xff] %v121
    %130 = vst [vmem:[#allocation2 + $0x20] sm:$0x1] %v122
    %131 = vst [vmem:[#allocation2 + $0x28] sm:$0x1] %v123
    %132 = vst [vmem:[#allocation2 + $0x30] sm:$0x1] %v124
    %133 = vst [vmem:[#allocation2 + $0x38] sm:$0x1] %v125
    %134 = vrot.lane.b32.xlu0 %v40, 16
    %v135 = vpop.permute.xlu0 %134
    %136 = vrot.lane.b32.xlu0 %v44, 16
    %v137 = vpop.permute.xlu0 %136
    %138 = vrot.lane.b32.xlu0 %v41, 16
    %v139 = vpop.permute.xlu0 %138
    %140 = vrot.lane.b32.xlu0 %v45, 16
    %v141 = vpop.permute.xlu0 %140
    %142 = vrot.lane.b32.xlu0 %v42, 16
    %v143 = vpop.permute.xlu0 %142
    %144 = vrot.lane.b32.xlu0 %v46, 16
    %v145 = vpop.permute.xlu0 %144
    %146 = vrot.lane.b32.xlu0 %v43, 16
    %v147 = vpop.permute.xlu0 %146
    %148 = vrot.lane.b32.xlu0 %v47, 16
    %v149 = vpop.permute.xlu0 %148
    %vm150 = vcmp.lt.s32.totalorder %v49, 16
    %v151 = vsel %vm150, %v143, %v147
    %v152 = vsel %vm150, %v145, %v149
    %v153 = vsel %vm150, %v139, %v143
    %v154 = vsel %vm150, %v141, %v145
    %v155 = vsel %vm150, %v135, %v139
    %v156 = vsel %vm150, %v137, %v141
    %v157 = vsel %vm150, %v147, %v135
    %v158 = vsel %vm150, %v149, %v137
    %v159 = vsel %vm65, 1, 0
    %v160 = vsel %vm66, 1, 0
    %v161 = vsel %vm67, 1, 0
    %v162 = vsel %vm68, 1, 0
    %vm163 = vcmp.eq.s32.totalorder %v159, 1
    %vm164 = vcmp.eq.s32.totalorder %v160, 1
    %vm165 = vcmp.eq.s32.totalorder %v161, 1
    %vm166 = vcmp.eq.s32.totalorder %v162, 1
    %v167 = vsel %vm163, %v157, 0.0
    %v168 = vsel %vm164, %v155, 0.0
    %v169 = vsel %vm165, %v153, 0.0
    %v170 = vsel %vm166, %v151, 0.0
    %v171 = vsel %vm163, %v158, 0.0
    %v172 = vsel %vm164, %v156, 0.0
    %v173 = vsel %vm165, %v154, 0.0
    %v174 = vsel %vm166, %v152, 0.0
    %vm183 = vcmask 1040384
    %v184 = vrot.slane %v167, 7
    %v185 = vrot.slane %v168, 7
    %v186 = vrot.slane %v169, 7
    %v187 = vrot.slane %v170, 7
    %v188 = vrot.slane %v171, 7
    %v189 = vsel %vm183, %v184, %v188
    %v190 = vrot.slane %v172, 7
    %v191 = vsel %vm183, %v185, %v190
    %v192 = vrot.slane %v173, 7
    %v193 = vsel %vm183, %v186, %v192
    %v194 = vrot.slane %v174, 7
    %v195 = vsel %vm183, %v187, %v194
    %204 = vst [vmem:[#allocation2 + $0x20] sm:$0xfe] %v184
    %205 = vst [vmem:[#allocation2 + $0x28] sm:$0xfe] %v185
    %206 = vst [vmem:[#allocation2 + $0x30] sm:$0xfe] %v186
    %207 = vst [vmem:[#allocation2 + $0x38] sm:$0xfe] %v187
    %208 = vst [vmem:[#allocation2 + $0x40] sm:$0x3] %v189
    %209 = vst [vmem:[#allocation2 + $0x48] sm:$0x3] %v191
    %210 = vst [vmem:[#allocation2 + $0x50] sm:$0x3] %v193
    %211 = vst [vmem:[#allocation2 + $0x58] sm:$0x3] %v195
    %212 = vrot.lane.b32.xlu0 %v40, 15
    %v213 = vpop.permute.xlu0 %212
    %214 = vrot.lane.b32.xlu0 %v44, 15
    %v215 = vpop.permute.xlu0 %214
    %216 = vrot.lane.b32.xlu0 %v41, 15
    %v217 = vpop.permute.xlu0 %216
    %218 = vrot.lane.b32.xlu0 %v45, 15
    %v219 = vpop.permute.xlu0 %218
    %220 = vrot.lane.b32.xlu0 %v42, 15
    %v221 = vpop.permute.xlu0 %220
    %222 = vrot.lane.b32.xlu0 %v46, 15
    %v223 = vpop.permute.xlu0 %222
    %224 = vrot.lane.b32.xlu0 %v43, 15
    %v225 = vpop.permute.xlu0 %224
    %226 = vrot.lane.b32.xlu0 %v47, 15
    %v227 = vpop.permute.xlu0 %226
    %vm228 = vcmp.lt.s32.totalorder %v49, 15
    %v229 = vsel %vm228, %v221, %v225
    %v230 = vsel %vm228, %v223, %v227
    %v231 = vsel %vm228, %v217, %v221
    %v232 = vsel %vm228, %v219, %v223
    %v233 = vsel %vm228, %v213, %v217
    %v234 = vsel %vm228, %v215, %v219
    %v235 = vsel %vm228, %v225, %v213
    %v236 = vsel %vm228, %v227, %v215
    %vm237 = vmand %vm65, %vm77
    %vm238 = vmand %vm66, %vm78
    %vm239 = vmand %vm67, %vm79
    %vm240 = vmand %vm68, %vm80
    %v241 = vsel %vm237, 1, 0
    %v242 = vsel %vm238, 1, 0
    %v243 = vsel %vm239, 1, 0
    %v244 = vsel %vm240, 1, 0
    %vm245 = vcmp.eq.s32.totalorder %v241, 1
    %vm246 = vcmp.eq.s32.totalorder %v242, 1
    %vm247 = vcmp.eq.s32.totalorder %v243, 1
    %vm248 = vcmp.eq.s32.totalorder %v244, 1
    %v249 = vsel %vm245, %v235, 0.0
    %v250 = vsel %vm246, %v233, 0.0
    %v251 = vsel %vm247, %v231, 0.0
    %v252 = vsel %vm248, %v229, 0.0
    %v253 = vsel %vm245, %v236, 0.0
    %v254 = vsel %vm246, %v234, 0.0
    %v255 = vsel %vm247, %v232, 0.0
    %v256 = vsel %vm248, %v230, 0.0
    %vm265 = vcmask 1041408
    %v266 = vrot.slane %v249, 6
    %v267 = vrot.slane %v250, 6
    %v268 = vrot.slane %v251, 6
    %v269 = vrot.slane %v252, 6
    %v270 = vrot.slane %v253, 6
    %v271 = vsel %vm265, %v266, %v270
    %v272 = vrot.slane %v254, 6
    %v273 = vsel %vm265, %v267, %v272
    %v274 = vrot.slane %v255, 6
    %v275 = vsel %vm265, %v268, %v274
    %v276 = vrot.slane %v256, 6
    %v277 = vsel %vm265, %v269, %v276
    %286 = vst [vmem:[#allocation2 + $0x40] sm:$0xfc] %v266
    %287 = vst [vmem:[#allocation2 + $0x48] sm:$0xfc] %v267
    %288 = vst [vmem:[#allocation2 + $0x50] sm:$0xfc] %v268
    %289 = vst [vmem:[#allocation2 + $0x58] sm:$0xfc] %v269
    %290 = vst [vmem:[#allocation2 + $0x60] sm:$0x7] %v271
    %291 = vst [vmem:[#allocation2 + $0x68] sm:$0x7] %v273
    %292 = vst [vmem:[#allocation2 + $0x70] sm:$0x7] %v275
    %293 = vst [vmem:[#allocation2 + $0x78] sm:$0x7] %v277
    %294 = vrot.lane.b32.xlu0 %v40, 1
    %v295 = vpop.permute.xlu0 %294
    %296 = vrot.lane.b32.xlu0 %v44, 1
    %v297 = vpop.permute.xlu0 %296
    %298 = vrot.lane.b32.xlu0 %v41, 1
    %v299 = vpop.permute.xlu0 %298
    %300 = vrot.lane.b32.xlu0 %v45, 1
    %v301 = vpop.permute.xlu0 %300
    %302 = vrot.lane.b32.xlu0 %v42, 1
    %v303 = vpop.permute.xlu0 %302
    %304 = vrot.lane.b32.xlu0 %v46, 1
    %v305 = vpop.permute.xlu0 %304
    %306 = vrot.lane.b32.xlu0 %v43, 1
    %v307 = vpop.permute.xlu0 %306
    %308 = vrot.lane.b32.xlu0 %v47, 1
    %v309 = vpop.permute.xlu0 %308
    %vm310 = vcmp.lt.s32.totalorder %v49, 1
    %v311 = vsel %vm310, %v303, %v307
    %v312 = vsel %vm310, %v305, %v309
    %v313 = vsel %vm310, %v299, %v303
    %v314 = vsel %vm310, %v301, %v305
    %v315 = vsel %vm310, %v295, %v299
    %v316 = vsel %vm310, %v297, %v301
    %v317 = vsel %vm310, %v307, %v295
    %v318 = vsel %vm310, %v309, %v297
    %v319 = vsel %vm73, 1, 0
    %v320 = vsel %vm74, 1, 0
    %v321 = vsel %vm75, 1, 0
    %v322 = vsel %vm76, 1, 0
    %vm323 = vcmp.eq.s32.totalorder %v319, 1
    %vm324 = vcmp.eq.s32.totalorder %v320, 1
    %vm325 = vcmp.eq.s32.totalorder %v321, 1
    %vm326 = vcmp.eq.s32.totalorder %v322, 1
    %v327 = vsel %vm323, %v317, 0.0
    %v328 = vsel %vm324, %v315, 0.0
    %v329 = vsel %vm325, %v313, 0.0
    %v330 = vsel %vm326, %v311, 0.0
    %v331 = vsel %vm323, %v318, 0.0
    %v332 = vsel %vm324, %v316, 0.0
    %v333 = vsel %vm325, %v314, 0.0
    %v334 = vsel %vm326, %v312, 0.0
    %vm343 = vcmask 1042432
    %v344 = vrot.slane %v327, 5
    %v345 = vrot.slane %v328, 5
    %v346 = vrot.slane %v329, 5
    %v347 = vrot.slane %v330, 5
    %v348 = vrot.slane %v331, 5
    %v349 = vsel %vm343, %v344, %v348
    %v350 = vrot.slane %v332, 5
    %v351 = vsel %vm343, %v345, %v350
    %v352 = vrot.slane %v333, 5
    %v353 = vsel %vm343, %v346, %v352
    %v354 = vrot.slane %v334, 5
    %v355 = vsel %vm343, %v347, %v354
    %364 = vst [vmem:[#allocation2 + $0x60] sm:$0xf8] %v344
    %365 = vst [vmem:[#allocation2 + $0x68] sm:$0xf8] %v345
    %366 = vst [vmem:[#allocation2 + $0x70] sm:$0xf8] %v346
    %367 = vst [vmem:[#allocation2 + $0x78] sm:$0xf8] %v347
    %368 = vst [vmem:[#allocation2 + $0x80] sm:$0xf] %v349
    %369 = vst [vmem:[#allocation2 + $0x88] sm:$0xf] %v351
    %370 = vst [vmem:[#allocation2 + $0x90] sm:$0xf] %v353
    %371 = vst [vmem:[#allocation2 + $0x98] sm:$0xf] %v355
    %vm380 = vcmask 1043456
    %v381 = vrot.slane %v40, 4
    %v382 = vrot.slane %v41, 4
    %v383 = vrot.slane %v42, 4
    %v384 = vrot.slane %v43, 4
    %v385 = vrot.slane %v44, 4
    %v386 = vsel %vm380, %v381, %v385
    %v387 = vrot.slane %v45, 4
    %v388 = vsel %vm380, %v382, %v387
    %v389 = vrot.slane %v46, 4
    %v390 = vsel %vm380, %v383, %v389
    %v391 = vrot.slane %v47, 4
    %v392 = vsel %vm380, %v384, %v391
    %401 = vst [vmem:[#allocation2 + $0x80] sm:$0xf0] %v381
    %402 = vst [vmem:[#allocation2 + $0x88] sm:$0xf0] %v382
    %403 = vst [vmem:[#allocation2 + $0x90] sm:$0xf0] %v383
    %404 = vst [vmem:[#allocation2 + $0x98] sm:$0xf0] %v384
    %405 = vst [vmem:[#allocation2 + $0xa0] sm:$0x1f] %v386
    %406 = vst [vmem:[#allocation2 + $0xa8] sm:$0x1f] %v388
    %407 = vst [vmem:[#allocation2 + $0xb0] sm:$0x1f] %v390
    %408 = vst [vmem:[#allocation2 + $0xb8] sm:$0x1f] %v392
    %409 = vrot.lane.b32.xlu0 %v40, 127
    %v410 = vpop.permute.xlu0 %409
    %411 = vrot.lane.b32.xlu0 %v44, 127
    %v412 = vpop.permute.xlu0 %411
    %413 = vrot.lane.b32.xlu0 %v41, 127
    %v414 = vpop.permute.xlu0 %413
    %415 = vrot.lane.b32.xlu0 %v45, 127
    %v416 = vpop.permute.xlu0 %415
    %417 = vrot.lane.b32.xlu0 %v42, 127
    %v418 = vpop.permute.xlu0 %417
    %419 = vrot.lane.b32.xlu0 %v46, 127
    %v420 = vpop.permute.xlu0 %419
    %421 = vrot.lane.b32.xlu0 %v43, 127
    %v422 = vpop.permute.xlu0 %421
    %423 = vrot.lane.b32.xlu0 %v47, 127
    %v424 = vpop.permute.xlu0 %423
    %vm425 = vcmp.lt.s32.totalorder %v49, 127
    %v426 = vsel %vm425, %v418, %v422
    %v427 = vsel %vm425, %v420, %v424
    %v428 = vsel %vm425, %v414, %v418
    %v429 = vsel %vm425, %v416, %v420
    %v430 = vsel %vm425, %v410, %v414
    %v431 = vsel %vm425, %v412, %v416
    %v432 = vsel %vm425, %v422, %v410
    %v433 = vsel %vm425, %v424, %v412
    %v434 = vsel %vm77, 1, 0
    %v435 = vsel %vm78, 1, 0
    %v436 = vsel %vm79, 1, 0
    %v437 = vsel %vm80, 1, 0
    %vm438 = vcmp.eq.s32.totalorder %v434, 1
    %vm439 = vcmp.eq.s32.totalorder %v435, 1
    %vm440 = vcmp.eq.s32.totalorder %v436, 1
    %vm441 = vcmp.eq.s32.totalorder %v437, 1
    %v442 = vsel %vm438, %v430, 0.0
    %v443 = vsel %vm439, %v428, 0.0
    %v444 = vsel %vm440, %v426, 0.0
    %v445 = vsel %vm441, %v432, 0.0
    %v446 = vsel %vm438, %v431, 0.0
    %v447 = vsel %vm439, %v429, 0.0
    %v448 = vsel %vm440, %v427, 0.0
    %v449 = vsel %vm441, %v433, 0.0
    %vm458 = vcmask 1044480
    %v459 = vrot.slane %v442, 3
    %v460 = vrot.slane %v443, 3
    %v461 = vrot.slane %v444, 3
    %v462 = vrot.slane %v445, 3
    %v463 = vrot.slane %v446, 3
    %v464 = vsel %vm458, %v459, %v463
    %v465 = vrot.slane %v447, 3
    %v466 = vsel %vm458, %v460, %v465
    %v467 = vrot.slane %v448, 3
    %v468 = vsel %vm458, %v461, %v467
    %v469 = vrot.slane %v449, 3
    %v470 = vsel %vm458, %v462, %v469
    %479 = vst [vmem:[#allocation2 + $0xa0] sm:$0xe0] %v459
    %480 = vst [vmem:[#allocation2 + $0xa8] sm:$0xe0] %v460
    %481 = vst [vmem:[#allocation2 + $0xb0] sm:$0xe0] %v461
    %482 = vst [vmem:[#allocation2 + $0xb8] sm:$0xe0] %v462
    %483 = vst [vmem:[#allocation2 + $0xc0] sm:$0x3f] %v464
    %484 = vst [vmem:[#allocation2 + $0xc8] sm:$0x3f] %v466
    %485 = vst [vmem:[#allocation2 + $0xd0] sm:$0x3f] %v468
    %486 = vst [vmem:[#allocation2 + $0xd8] sm:$0x3f] %v470
    %487 = vrot.lane.b32.xlu0 %v40, 113
    %v488 = vpop.permute.xlu0 %487
    %489 = vrot.lane.b32.xlu0 %v44, 113
    %v490 = vpop.permute.xlu0 %489
    %491 = vrot.lane.b32.xlu0 %v41, 113
    %v492 = vpop.permute.xlu0 %491
    %493 = vrot.lane.b32.xlu0 %v45, 113
    %v494 = vpop.permute.xlu0 %493
    %495 = vrot.lane.b32.xlu0 %v42, 113
    %v496 = vpop.permute.xlu0 %495
    %497 = vrot.lane.b32.xlu0 %v46, 113
    %v498 = vpop.permute.xlu0 %497
    %499 = vrot.lane.b32.xlu0 %v43, 113
    %v500 = vpop.permute.xlu0 %499
    %501 = vrot.lane.b32.xlu0 %v47, 113
    %v502 = vpop.permute.xlu0 %501
    %vm503 = vcmp.lt.s32.totalorder %v49, 113
    %v504 = vsel %vm503, %v496, %v500
    %v505 = vsel %vm503, %v498, %v502
    %v506 = vsel %vm503, %v492, %v496
    %v507 = vsel %vm503, %v494, %v498
    %v508 = vsel %vm503, %v488, %v492
    %v509 = vsel %vm503, %v490, %v494
    %v510 = vsel %vm503, %v500, %v488
    %v511 = vsel %vm503, %v502, %v490
    %vm512 = vmand %vm69, %vm73
    %vm513 = vmand %vm70, %vm74
    %vm514 = vmand %vm71, %vm75
    %vm515 = vmand %vm72, %vm76
    %v516 = vsel %vm512, 1, 0
    %v517 = vsel %vm513, 1, 0
    %v518 = vsel %vm514, 1, 0
    %v519 = vsel %vm515, 1, 0
    %vm520 = vcmp.eq.s32.totalorder %v516, 1
    %vm521 = vcmp.eq.s32.totalorder %v517, 1
    %vm522 = vcmp.eq.s32.totalorder %v518, 1
    %vm523 = vcmp.eq.s32.totalorder %v519, 1
    %v524 = vsel %vm520, %v508, 0.0
    %v525 = vsel %vm521, %v506, 0.0
    %v526 = vsel %vm522, %v504, 0.0
    %v527 = vsel %vm523, %v510, 0.0
    %v528 = vsel %vm520, %v509, 0.0
    %v529 = vsel %vm521, %v507, 0.0
    %v530 = vsel %vm522, %v505, 0.0
    %v531 = vsel %vm523, %v511, 0.0
    %vm540 = vcmask 1045504
    %v541 = vrot.slane %v524, 2
    %v542 = vrot.slane %v525, 2
    %v543 = vrot.slane %v526, 2
    %v544 = vrot.slane %v527, 2
    %v545 = vrot.slane %v528, 2
    %v546 = vsel %vm540, %v541, %v545
    %v547 = vrot.slane %v529, 2
    %v548 = vsel %vm540, %v542, %v547
    %v549 = vrot.slane %v530, 2
    %v550 = vsel %vm540, %v543, %v549
    %v551 = vrot.slane %v531, 2
    %v552 = vsel %vm540, %v544, %v551
    %561 = vst [vmem:[#allocation2 + $0xc0] sm:$0xc0] %v541
    %562 = vst [vmem:[#allocation2 + $0xc8] sm:$0xc0] %v542
    %563 = vst [vmem:[#allocation2 + $0xd0] sm:$0xc0] %v543
    %564 = vst [vmem:[#allocation2 + $0xd8] sm:$0xc0] %v544
    %565 = vst [vmem:[#allocation2 + $0xe0] sm:$0x7f] %v546
    %566 = vst [vmem:[#allocation2 + $0xe8] sm:$0x7f] %v548
    %567 = vst [vmem:[#allocation2 + $0xf0] sm:$0x7f] %v550
    %568 = vst [vmem:[#allocation2 + $0xf8] sm:$0x7f] %v552
    %569 = vrot.lane.b32.xlu0 %v40, 112
    %v570 = vpop.permute.xlu0 %569
    %571 = vrot.lane.b32.xlu0 %v44, 112
    %v572 = vpop.permute.xlu0 %571
    %573 = vrot.lane.b32.xlu0 %v41, 112
    %v574 = vpop.permute.xlu0 %573
    %575 = vrot.lane.b32.xlu0 %v45, 112
    %v576 = vpop.permute.xlu0 %575
    %577 = vrot.lane.b32.xlu0 %v42, 112
    %v578 = vpop.permute.xlu0 %577
    %579 = vrot.lane.b32.xlu0 %v46, 112
    %v580 = vpop.permute.xlu0 %579
    %581 = vrot.lane.b32.xlu0 %v43, 112
    %v582 = vpop.permute.xlu0 %581
    %583 = vrot.lane.b32.xlu0 %v47, 112
    %v584 = vpop.permute.xlu0 %583
    %vm585 = vcmp.lt.s32.totalorder %v49, 112
    %v586 = vsel %vm585, %v578, %v582
    %v587 = vsel %vm585, %v580, %v584
    %v588 = vsel %vm585, %v574, %v578
    %v589 = vsel %vm585, %v576, %v580
    %v590 = vsel %vm585, %v570, %v574
    %v591 = vsel %vm585, %v572, %v576
    %v592 = vsel %vm585, %v582, %v570
    %v593 = vsel %vm585, %v584, %v572
    %v594 = vsel %vm69, 1, 0
    %v595 = vsel %vm70, 1, 0
    %v596 = vsel %vm71, 1, 0
    %v597 = vsel %vm72, 1, 0
    %vm598 = vcmp.eq.s32.totalorder %v594, 1
    %vm599 = vcmp.eq.s32.totalorder %v595, 1
    %vm600 = vcmp.eq.s32.totalorder %v596, 1
    %vm601 = vcmp.eq.s32.totalorder %v597, 1
    %v602 = vsel %vm598, %v590, 0.0
    %v603 = vsel %vm599, %v588, 0.0
    %v604 = vsel %vm600, %v586, 0.0
    %v605 = vsel %vm601, %v592, 0.0
    %v606 = vsel %vm598, %v591, 0.0
    %v607 = vsel %vm599, %v589, 0.0
    %v608 = vsel %vm600, %v587, 0.0
    %v609 = vsel %vm601, %v593, 0.0
    %vm618 = vcmask 1046528
    %v619 = vrot.slane %v602, 1
    %v620 = vrot.slane %v603, 1
    %v621 = vrot.slane %v604, 1
    %v622 = vrot.slane %v605, 1
    %v623 = vrot.slane %v606, 1
    %v624 = vsel %vm618, %v619, %v623
    %v625 = vrot.slane %v607, 1
    %v626 = vsel %vm618, %v620, %v625
    %v627 = vrot.slane %v608, 1
    %v628 = vsel %vm618, %v621, %v627
    %v629 = vrot.slane %v609, 1
    %v630 = vsel %vm618, %v622, %v629
    %639 = vst [vmem:[#allocation2 + $0xe0] sm:$0x80] %v619
    %640 = vst [vmem:[#allocation2 + $0xe8] sm:$0x80] %v620
    %641 = vst [vmem:[#allocation2 + $0xf0] sm:$0x80] %v621
    %642 = vst [vmem:[#allocation2 + $0xf8] sm:$0x80] %v622
    %643 = vst [vmem:[#allocation2 + $0x100] sm:$0xff] %v624
    %644 = vst [vmem:[#allocation2 + $0x108] sm:$0xff] %v626
    %645 = vst [vmem:[#allocation2 + $0x110] sm:$0xff] %v628
    %646 = vst [vmem:[#allocation2 + $0x118] sm:$0xff] %v630
    %647 = vrot.lane.b32.xlu0 %v40, 111
    %v648 = vpop.permute.xlu0 %647
    %649 = vrot.lane.b32.xlu0 %v44, 111
    %v650 = vpop.permute.xlu0 %649
    %651 = vrot.lane.b32.xlu0 %v41, 111
    %v652 = vpop.permute.xlu0 %651
    %653 = vrot.lane.b32.xlu0 %v45, 111
    %v654 = vpop.permute.xlu0 %653
    %655 = vrot.lane.b32.xlu0 %v42, 111
    %v656 = vpop.permute.xlu0 %655
    %657 = vrot.lane.b32.xlu0 %v46, 111
    %v658 = vpop.permute.xlu0 %657
    %659 = vrot.lane.b32.xlu0 %v43, 111
    %v660 = vpop.permute.xlu0 %659
    %661 = vrot.lane.b32.xlu0 %v47, 111
    %v662 = vpop.permute.xlu0 %661
    %vm663 = vcmp.lt.s32.totalorder %v49, 111
    %v664 = vsel %vm663, %v656, %v660
    %v665 = vsel %vm663, %v658, %v662
    %v666 = vsel %vm663, %v652, %v656
    %v667 = vsel %vm663, %v654, %v658
    %v668 = vsel %vm663, %v648, %v652
    %v669 = vsel %vm663, %v650, %v654
    %v670 = vsel %vm663, %v660, %v648
    %v671 = vsel %vm663, %v662, %v650
    %vm672 = vmand %vm69, %vm77
    %vm673 = vmand %vm70, %vm78
    %vm674 = vmand %vm71, %vm79
    %vm675 = vmand %vm72, %vm80
    %v676 = vsel %vm672, 1, 0
    %v677 = vsel %vm673, 1, 0
    %v678 = vsel %vm674, 1, 0
    %v679 = vsel %vm675, 1, 0
    %vm680 = vcmp.eq.s32.totalorder %v676, 1
    %vm681 = vcmp.eq.s32.totalorder %v677, 1
    %vm682 = vcmp.eq.s32.totalorder %v678, 1
    %vm683 = vcmp.eq.s32.totalorder %v679, 1
    %v684 = vsel %vm680, %v668, 0.0
    %v685 = vsel %vm681, %v666, 0.0
    %v686 = vsel %vm682, %v664, 0.0
    %v687 = vsel %vm683, %v670, 0.0
    %v688 = vsel %vm680, %v669, 0.0
    %v689 = vsel %vm681, %v667, 0.0
    %v690 = vsel %vm682, %v665, 0.0
    %v691 = vsel %vm683, %v671, 0.0
    %692 = vst [vmem:[#allocation2 + $0x120] sm:$0xff] %v684
    %693 = vst [vmem:[#allocation2 + $0x128] sm:$0xff] %v685
    %694 = vst [vmem:[#allocation2 + $0x130] sm:$0xff] %v686
    %695 = vst [vmem:[#allocation2 + $0x138] sm:$0xff] %v687
    %696 = vst [vmem:[#allocation2 + $0x140] sm:$0x1] %v688
    %697 = vst [vmem:[#allocation2 + $0x148] sm:$0x1] %v689
    %698 = vst [vmem:[#allocation2 + $0x150] sm:$0x1] %v690
    %699 = vst [vmem:[#allocation2 + $0x158] sm:$0x1] %v691
    %v700 = vlaneseq
    %vm701 = vcmp.ge.s32.totalorder %v700, 0
    %vm702 = vcmp.lt.s32.totalorder %v700, 512
    %vm703 = vmand %vm701, %vm702
    %s704 = scalar_lea.vmem [#allocation2], 321
    %705 = vst.msk [vmem:[%s704] ss:$8 sm:$0xf] %vm703, 1.0
    %706 = vst.msk [vmem:[%s704] ss:$8 sm:$0x0] %vm703, 1.0
    %v707 = vld [vmem:[#allocation6] sm:$0xff]
    %v708 = vld [vmem:[#allocation6 + $0x8] sm:$0x1]
    %v709 = vld [vmem:[#allocation2] sm:$0xff]
    %v710 = vld [vmem:[#allocation2 + $0x8] sm:$0xff]
    %v711 = vld [vmem:[#allocation2 + $0x10] sm:$0xff]
    %v712 = vld [vmem:[#allocation2 + $0x18] sm:$0xff]
    %v713 = vld [vmem:[#allocation2 + $0x20] sm:$0xff]
    %v714 = vld [vmem:[#allocation2 + $0x28] sm:$0xff]
    %v715 = vld [vmem:[#allocation2 + $0x30] sm:$0xff]
    %v716 = vld [vmem:[#allocation2 + $0x38] sm:$0xff]
    %v717 = vld [vmem:[#allocation2 + $0x40] sm:$0xff]
    %v718 = vld [vmem:[#allocation2 + $0x48] sm:$0xff]
    %v719 = vld [vmem:[#allocation2 + $0x50] sm:$0xff]
    %v720 = vld [vmem:[#allocation2 + $0x58] sm:$0xff]
    %v721 = vld [vmem:[#allocation2 + $0x60] sm:$0xff]
    %v722 = vld [vmem:[#allocation2 + $0x68] sm:$0xff]
    %v723 = vld [vmem:[#allocation2 + $0x70] sm:$0xff]
    %v724 = vld [vmem:[#allocation2 + $0x78] sm:$0xff]
    %v725 = vld [vmem:[#allocation2 + $0x80] sm:$0xff]
    %v726 = vld [vmem:[#allocation2 + $0x88] sm:$0xff]
    %v727 = vld [vmem:[#allocation2 + $0x90] sm:$0xff]
    %v728 = vld [vmem:[#allocation2 + $0x98] sm:$0xff]
    %v729 = vld [vmem:[#allocation2 + $0xa0] sm:$0xff]
    %v730 = vld [vmem:[#allocation2 + $0xa8] sm:$0xff]
    %v731 = vld [vmem:[#allocation2 + $0xb0] sm:$0xff]
    %v732 = vld [vmem:[#allocation2 + $0xb8] sm:$0xff]
    %v733 = vld [vmem:[#allocation2 + $0xc0] sm:$0xff]
    %v734 = vld [vmem:[#allocation2 + $0xc8] sm:$0xff]
    %v735 = vld [vmem:[#allocation2 + $0xd0] sm:$0xff]
    %v736 = vld [vmem:[#allocation2 + $0xd8] sm:$0xff]
    %v737 = vld [vmem:[#allocation2 + $0xe0] sm:$0xff]
    %v738 = vld [vmem:[#allocation2 + $0xe8] sm:$0xff]
    %v739 = vld [vmem:[#allocation2 + $0xf0] sm:$0xff]
    %v740 = vld [vmem:[#allocation2 + $0xf8] sm:$0xff]
    %v741 = vld [vmem:[#allocation2 + $0x100] sm:$0xff]
    %v742 = vld [vmem:[#allocation2 + $0x108] sm:$0xff]
    %v743 = vld [vmem:[#allocation2 + $0x110] sm:$0xff]
    %v744 = vld [vmem:[#allocation2 + $0x118] sm:$0xff]
    %v745 = vld [vmem:[#allocation2 + $0x120] sm:$0xff]
    %v746 = vld [vmem:[#allocation2 + $0x128] sm:$0xff]
    %v747 = vld [vmem:[#allocation2 + $0x130] sm:$0xff]
    %v748 = vld [vmem:[#allocation2 + $0x138] sm:$0xff]
    %v749 = vld [vmem:[#allocation2 + $0x140] sm:$0x3]
    %v750 = vld [vmem:[#allocation2 + $0x148] sm:$0x3]
    %v751 = vld [vmem:[#allocation2 + $0x150] sm:$0x3]
    %v752 = vld [vmem:[#allocation2 + $0x158] sm:$0x3]
    %vm753 = vcmask 670720
    %v755 = vsel %vm753, %v707, 0
    %v758 = vsel %vm753, %v708, 0
    %v761 = vsel %vm265, %v749, 0
    %v764 = vsel %vm265, %v750, 0
    %v767 = vsel %vm265, %v751, 0
    %v770 = vsel %vm265, %v752, 0
    %772 = vmatprep.subr.mxu0 0.0
    %773 = vmatpush1.msra.mxu0 0.0
    %774 = vmatprep.subr.mxu0 0.0
    %775 = vmatpush1.msra.mxu0 0.0
    %776 = vmatprep.subr.mxu0 0.0
    %777 = vmatpush1.msra.mxu0 0.0
    %778 = vmatprep.subr.mxu0 0.0
    %779 = vmatpush1.msra.mxu0 0.0
    %780 = vmatprep.subr.mxu0 0.0
    %781 = vmatpush1.msra.mxu0 0.0
    %782 = vmatprep.subr.mxu0 %v764
    %783 = vmatpush1.msra.mxu0 %v761
    %784 = vmatprep.subr.mxu0 %v746
    %785 = vmatpush1.msra.mxu0 %v745
    %786 = vmatprep.subr.mxu0 %v742
    %787 = vmatpush1.msra.mxu0 %v741
    %788 = vmatprep.subr.mxu0 %v738
    %789 = vmatpush1.msra.mxu0 %v737
    %790 = vmatprep.subr.mxu0 %v734
    %791 = vmatpush1.msra.mxu0 %v733
    %792 = vmatprep.subr.mxu0 %v730
    %793 = vmatpush1.msra.mxu0 %v729
    %794 = vmatprep.subr.mxu0 %v726
    %795 = vmatpush1.msra.mxu0 %v725
    %796 = vmatprep.subr.mxu0 %v722
    %797 = vmatpush1.msra.mxu0 %v721
    %798 = vmatprep.subr.mxu0 %v718
    %799 = vmatpush1.msra.mxu0 %v717
    %800 = vmatprep.subr.mxu0 %v714
    %801 = vmatpush1.msra.mxu0 %v713
    %802 = vmatprep.subr.mxu0 %v710
    %803 = vmatpush1.msra.mxu0 %v709
    %804 = vmatprep.subr.mxu0 0.0
    %805 = vmatpush2.msra.mxu0 0.0
    %806 = vmatprep.subr.mxu0 0.0
    %807 = vmatpush2.msra.mxu0 0.0
    %808 = vmatprep.subr.mxu0 0.0
    %809 = vmatpush2.msra.mxu0 0.0
    %810 = vmatprep.subr.mxu0 0.0
    %811 = vmatpush2.msra.mxu0 0.0
    %812 = vmatprep.subr.mxu0 0.0
    %813 = vmatpush2.msra.mxu0 0.0
    %814 = vmatprep.subr.mxu0 0.0
    %815 = vmatpush2.msra.mxu0 0.0
    %816 = vmatprep.subr.mxu0 0.0
    %817 = vmatpush2.msra.mxu0 0.0
    %818 = vmatprep.subr.mxu0 0.0
    %819 = vmatpush2.msra.mxu0 0.0
    %820 = vmatprep.subr.mxu0 0.0
    %821 = vmatpush2.msra.mxu0 0.0
    %822 = vmatprep.subr.mxu0 0.0
    %823 = vmatpush2.msra.mxu0 0.0
    %824 = vmatprep.subr.mxu0 0.0
    %825 = vmatpush2.msra.mxu0 0.0
    %826 = vmatprep.subr.mxu0 0.0
    %827 = vmatpush2.msra.mxu0 0.0
    %828 = vmatprep.subr.mxu0 0.0
    %829 = vmatpush2.msra.mxu0 0.0
    %830 = vmatprep.subr.mxu0 0.0
    %831 = vmatpush2.msra.mxu0 0.0
    %832 = vmatprep.subr.mxu0 0.0
    %833 = vmatpush2.msra.mxu0 0.0
    %834 = vmatprep.subr.mxu0 0.0
    %835 = vmatpush2.msra.mxu0 0.0
    %836 = vmatprep.mubr.f32.mxu0 0.0
    %837 = vmatmul.mubr.f32.gmra.mxu0 %v755
    %v838 = vpop.f32.mrf.mxu0
    %v839 = vadd.f32 0.0, %v838
    %v840 = vpop.f32.mrf.mxu0
    %v841 = vadd.f32 0.0, %v840
    %842 = vmatprep.mubr.f32.mxu0 0.0
    %843 = vmatmul.mubr.f32.gmra.mxu0 %v758
    %v844 = vpop.f32.mrf.mxu0
    %v845 = vadd.f32 0.0, %v844
    %v846 = vpop.f32.mrf.mxu0
    %v847 = vadd.f32 0.0, %v846
    %848 = vdwg.mxu0
    %849 = vmatprep.subr.mxu0 0.0
    %850 = vmatpush1.msra.mxu0 0.0
    %851 = vmatprep.subr.mxu0 0.0
    %852 = vmatpush1.msra.mxu0 0.0
    %853 = vmatprep.subr.mxu0 0.0
    %854 = vmatpush1.msra.mxu0 0.0
    %855 = vmatprep.subr.mxu0 0.0
    %856 = vmatpush1.msra.mxu0 0.0
    %857 = vmatprep.subr.mxu0 0.0
    %858 = vmatpush1.msra.mxu0 0.0
    %859 = vmatprep.subr.mxu0 %v770
    %860 = vmatpush1.msra.mxu0 %v767
    %861 = vmatprep.subr.mxu0 %v748
    %862 = vmatpush1.msra.mxu0 %v747
    %863 = vmatprep.subr.mxu0 %v744
    %864 = vmatpush1.msra.mxu0 %v743
    %865 = vmatprep.subr.mxu0 %v740
    %866 = vmatpush1.msra.mxu0 %v739
    %867 = vmatprep.subr.mxu0 %v736
    %868 = vmatpush1.msra.mxu0 %v735
    %869 = vmatprep.subr.mxu0 %v732
    %870 = vmatpush1.msra.mxu0 %v731
    %871 = vmatprep.subr.mxu0 %v728
    %872 = vmatpush1.msra.mxu0 %v727
    %873 = vmatprep.subr.mxu0 %v724
    %874 = vmatpush1.msra.mxu0 %v723
    %875 = vmatprep.subr.mxu0 %v720
    %876 = vmatpush1.msra.mxu0 %v719
    %877 = vmatprep.subr.mxu0 %v716
    %878 = vmatpush1.msra.mxu0 %v715
    %879 = vmatprep.subr.mxu0 %v712
    %880 = vmatpush1.msra.mxu0 %v711
    %881 = vmatprep.subr.mxu0 0.0
    %882 = vmatpush2.msra.mxu0 0.0
    %883 = vmatprep.subr.mxu0 0.0
    %884 = vmatpush2.msra.mxu0 0.0
    %885 = vmatprep.subr.mxu0 0.0
    %886 = vmatpush2.msra.mxu0 0.0
    %887 = vmatprep.subr.mxu0 0.0
    %888 = vmatpush2.msra.mxu0 0.0
    %889 = vmatprep.subr.mxu0 0.0
    %890 = vmatpush2.msra.mxu0 0.0
    %891 = vmatprep.subr.mxu0 0.0
    %892 = vmatpush2.msra.mxu0 0.0
    %893 = vmatprep.subr.mxu0 0.0
    %894 = vmatpush2.msra.mxu0 0.0
    %895 = vmatprep.subr.mxu0 0.0
    %896 = vmatpush2.msra.mxu0 0.0
    %897 = vmatprep.subr.mxu0 0.0
    %898 = vmatpush2.msra.mxu0 0.0
    %899 = vmatprep.subr.mxu0 0.0
    %900 = vmatpush2.msra.mxu0 0.0
    %901 = vmatprep.subr.mxu0 0.0
    %902 = vmatpush2.msra.mxu0 0.0
    %903 = vmatprep.subr.mxu0 0.0
    %904 = vmatpush2.msra.mxu0 0.0
    %905 = vmatprep.subr.mxu0 0.0
    %906 = vmatpush2.msra.mxu0 0.0
    %907 = vmatprep.subr.mxu0 0.0
    %908 = vmatpush2.msra.mxu0 0.0
    %909 = vmatprep.subr.mxu0 0.0
    %910 = vmatpush2.msra.mxu0 0.0
    %911 = vmatprep.subr.mxu0 0.0
    %912 = vmatpush2.msra.mxu0 0.0
    %913 = vmatprep.mubr.f32.mxu0 0.0
    %914 = vmatmul.mubr.f32.gmra.mxu0 %v755
    %v915 = vpop.f32.mrf.mxu0
    %v916 = vadd.f32 0.0, %v915
    %v917 = vpop.f32.mrf.mxu0
    %v918 = vadd.f32 0.0, %v917
    %919 = vmatprep.mubr.f32.mxu0 0.0
    %920 = vmatmul.mubr.f32.gmra.mxu0 %v758
    %v921 = vpop.f32.mrf.mxu0
    %v922 = vadd.f32 0.0, %v921
    %v923 = vpop.f32.mrf.mxu0
    %v924 = vadd.f32 0.0, %v923
    %925 = vdwg.mxu0
    %926 = vst [vmem:[#allocation8] sm:$0xff] %v839
    %927 = vst [vmem:[#allocation8 + $0x8] sm:$0xff] %v841
    %928 = vst [vmem:[#allocation8 + $0x10] sm:$0xff] %v916
    %929 = vst [vmem:[#allocation8 + $0x18] sm:$0xff] %v918
    %930 = vst [vmem:[#allocation8 + $0x20] sm:$0x1] %v845
    %931 = vst [vmem:[#allocation8 + $0x28] sm:$0x1] %v847
    %932 = vst [vmem:[#allocation8 + $0x30] sm:$0x1] %v922
    %933 = vst [vmem:[#allocation8 + $0x38] sm:$0x1] %v924
    // Predicated region
    $region18: #{tpu_custom_call.1} parent=1 // pred_check
      _
    $region19: #{tpu_custom_call.1} parent=1 // pred_check_branch
      %935 = sbr.rel (0) target = $region21
    $region20: #{tpu_custom_call.1} parent=1 // pred_region
      %s937 = ssub.s32 1024, 1024
      %938 = vsyncadd [#allocation5], %s937
      %s939 = sshll.u32 [#allocation8], 4
      %s940 = int_to_ptr.vmem [resolvable:$true] %s939
      %945 = dma.vmem_to_hbm [thread:$0]  %s940, 1024, %s2, [#allocation5], 512, 512, 32
    $region21: #{tpu_custom_call.1} parent=1 // pred_fallthru
      _
    // Predicated region
    $region22: #{tpu_custom_call.1} parent=1 // pred_check
      _
    $region23: #{tpu_custom_call.1} parent=1 // pred_check_branch
      %947 = sbr.rel (0) target = $region25
    $region24: #{tpu_custom_call.1} parent=1 // pred_region
      %948 = dma.done [#allocation5], 1024
    $region25: #{tpu_custom_call.1} parent=1 // pred_fallthru
      _
    %949 = vsyncpa [#allocation4], 1
    %950 = vsyncpa [#allocation7], 1
    %951 = vsyncpa [#allocation5], 1

</llo_original>
